<compile_context>
chip_gen: v5e
topology: v5e:2x2
jax: 0.10.0
libtpu: 0.0.40
codegen_flags: <defaults>
</compile_context>

<pallas_src>
import jax
import jax.numpy as jnp
from jax.experimental import pallas as pl
from jax.experimental.pallas import tpu as pltpu

LATENT_DIM = 16
HIDDEN = 32      # cfg.e_hidden == cfg.d_hidden (must match for shape consistency)


def _decoder_kernel(x_ref, w1t_ref, b1_ref, w2t_mu_ref, b2_mu_ref,
                    w2t_lv_ref, b2_lv_ref, mu_ref, lv_ref):
    # x_ref:      (tb, latent)     f32   (natural layout; cast to bf16 here)
    # w1t_ref:    (latent, hidden) bf16  b1_ref:    (1, hidden) f32
    # w2t_mu_ref: (hidden, latent) bf16  b2_mu_ref: (1, latent) f32
    # w2t_lv_ref: (hidden, latent) bf16  b2_lv_ref: (1, latent) f32
    # mu_ref / lv_ref: (tb, latent) f32
    x = x_ref[...].astype(jnp.bfloat16)
    h = jnp.dot(x, w1t_ref[...], preferred_element_type=jnp.float32)
    h = jnp.maximum(h + b1_ref[...], 0.0)                 # ReLU in f32
    hb = h.astype(jnp.bfloat16)
    mu = jnp.dot(hb, w2t_mu_ref[...], preferred_element_type=jnp.float32)
    lv = jnp.dot(hb, w2t_lv_ref[...], preferred_element_type=jnp.float32)
    mu_ref[...] = (mu + b2_mu_ref[...]).astype(mu_ref.dtype)
    lv_ref[...] = (lv + b2_lv_ref[...]).astype(lv_ref.dtype)


def _round_up(n, m):
    return ((n + m - 1) // m) * m


def gaussian_decoder(x, w1, b1, w2, b2, *, block_b=8192, min_pallas_batch=256):
    """Fused GaussianDecoder forward.

    x:  (B, latent) f32
    w1: (hidden, latent), b1: (hidden,)        -- PyTorch nn.Linear layout
    w2: (2*latent, hidden), b2: (2*latent,)
    Returns (mu, logvar), each (B, latent) f32.
    """
    B, latent = x.shape
    hidden = w1.shape[0]
    out_dim = w2.shape[0]
    assert out_dim == 2 * latent and w1.shape[1] == latent and w2.shape[1] == hidden

    if B < min_pallas_batch:
        # Tiny batch: kernel launch + layout overhead exceeds the work; the
        # fused jnp path is strictly better here.
        h = jnp.maximum(x @ w1.T + b1, 0.0)
        out = h @ w2.T + b2
        return out[:, :latent], out[:, latent:]

    # Pre-transpose / pre-split the *tiny* parameters once (a few KB total) so
    # the kernel consumes x in its natural layout and writes mu/logvar directly.
    w1t = w1.T.astype(jnp.bfloat16)                       # (latent, hidden)
    w2t_mu = w2[:latent].T.astype(jnp.bfloat16)           # (hidden, latent)
    w2t_lv = w2[latent:].T.astype(jnp.bfloat16)           # (hidden, latent)
    b1r = b1.reshape(1, hidden).astype(jnp.float32)
    b2_mu = b2[:latent].reshape(1, latent).astype(jnp.float32)
    b2_lv = b2[latent:].reshape(1, latent).astype(jnp.float32)

    # Batch tile: big (amortize per-step overhead) but >= 2 grid steps so the
    # "parallel" axis actually uses both v7x TensorCores. Ragged last block is
    # fine (feature-axis contraction only; OOB writeback is clipped).
    tb = min(block_b, max(128, _round_up(pl.cdiv(B, 2), 128)))
    grid = (pl.cdiv(B, tb),)

    out_shape = (jax.ShapeDtypeStruct((B, latent), jnp.float32),
                 jax.ShapeDtypeStruct((B, latent), jnp.float32))

    mu, logvar = pl.pallas_call(
        _decoder_kernel,
        out_shape=out_shape,
        grid_spec=pltpu.PrefetchScalarGridSpec(
            num_scalar_prefetch=0,
            grid=grid,
            in_specs=[
                pl.BlockSpec((tb, latent), lambda i: (i, 0)),       # x tile
                pl.BlockSpec((latent, hidden), lambda i: (0, 0)),   # weights /
                pl.BlockSpec((1, hidden), lambda i: (0, 0)),        # biases stay
                pl.BlockSpec((hidden, latent), lambda i: (0, 0)),   # resident
                pl.BlockSpec((1, latent), lambda i: (0, 0)),
                pl.BlockSpec((hidden, latent), lambda i: (0, 0)),
                pl.BlockSpec((1, latent), lambda i: (0, 0)),
            ],
            out_specs=(
                pl.BlockSpec((tb, latent), lambda i: (i, 0)),       # mu
                pl.BlockSpec((tb, latent), lambda i: (i, 0)),       # logvar
            ),
        ),
        compiler_params=pltpu.CompilerParams(
            dimension_semantics=("parallel",)),   # shards batch across v7x TCs
    )(x.astype(jnp.float32), w1t, b1r, w2t_mu, b2_mu, w2t_lv, b2_lv)

    return mu, logvar


def _reference(x, w1, b1, w2, b2):
    h = jnp.maximum(x @ w1.T + b1, 0.0)
    out = h @ w2.T + b2
    latent = w2.shape[0] // 2
    return out[:, :latent], out[:, latent:]


def _check(B, **kwargs):
    key = jax.random.PRNGKey(0)
    kx, k1, k2, k3, k4 = jax.random.split(key, 5)
    # PyTorch nn.Linear layout: W (out, in), b (out,)
    x = jax.random.normal(kx, (B, LATENT_DIM), dtype=jnp.float32)
    w1 = jax.random.normal(k1, (HIDDEN, LATENT_DIM), dtype=jnp.float32) * 0.1
    b1 = jax.random.normal(k2, (HIDDEN,), dtype=jnp.float32) * 0.1
    w2 = jax.random.normal(k3, (2 * LATENT_DIM, HIDDEN), dtype=jnp.float32) * 0.1
    b2 = jax.random.normal(k4, (2 * LATENT_DIM,), dtype=jnp.float32) * 0.1

    mu, logvar = gaussian_decoder(x, w1, b1, w2, b2, **kwargs)
    jax.block_until_ready((mu, logvar))

    mu_ref, logvar_ref = _reference(x, w1, b1, w2, b2)
    assert mu.shape == (B, LATENT_DIM) and logvar.shape == (B, LATENT_DIM)
    # bf16 MXU inputs with f32 accumulation -> loose-but-tight-enough tolerance.
    assert jnp.allclose(mu, mu_ref, atol=2e-2, rtol=2e-2), f"mu mismatch (B={B})"
    assert jnp.allclose(logvar, logvar_ref, atol=2e-2, rtol=2e-2), f"logvar mismatch (B={B})"


if __name__ == "__main__":
    # Tiny batch (module's natural small shape): fused jnp fallback path.
    _check(8)
    # Pallas path, batch divides the tile exactly (tb=256, 2 grid steps).
    _check(512)
    # Pallas path, ragged last block (B=384 -> tb=256, blocks of 256 + 128).
    _check(384)
    print("KERNEL_OK")
</pallas_src>

<mosaic_0001>
module attributes {stable_mosaic.version = 11 : i64} {
  func.func @_decoder_kernel(%arg0: i32, %arg1: memref<256x16xf32, #tpu.memory_space<vmem>>, %arg2: memref<16x32xbf16, #tpu.memory_space<vmem>>, %arg3: memref<1x32xf32, #tpu.memory_space<vmem>>, %arg4: memref<32x16xbf16, #tpu.memory_space<vmem>>, %arg5: memref<1x16xf32, #tpu.memory_space<vmem>>, %arg6: memref<32x16xbf16, #tpu.memory_space<vmem>>, %arg7: memref<1x16xf32, #tpu.memory_space<vmem>>, %arg8: memref<256x16xf32, #tpu.memory_space<vmem>>, %arg9: memref<256x16xf32, #tpu.memory_space<vmem>>) attributes {dimension_semantics = [#tpu.dimension_semantics<parallel>], iteration_bounds = array<i64: 2>, scalar_prefetch = 0 : i64, scratch_operands = 0 : i64, tpu.core_type = #tpu.core_type<tc>, window_params = [{transform_indices = @transform_0, window_bounds = array<i64: 256, 16>}, {pipeline_mode = #tpu.pipeline_mode<synchronous>, transform_indices = @transform_1, window_bounds = array<i64: 16, 32>}, {pipeline_mode = #tpu.pipeline_mode<synchronous>, transform_indices = @transform_2, window_bounds = array<i64: 1, 32>}, {pipeline_mode = #tpu.pipeline_mode<synchronous>, transform_indices = @transform_3, window_bounds = array<i64: 32, 16>}, {pipeline_mode = #tpu.pipeline_mode<synchronous>, transform_indices = @transform_4, window_bounds = array<i64: 1, 16>}, {pipeline_mode = #tpu.pipeline_mode<synchronous>, transform_indices = @transform_5, window_bounds = array<i64: 32, 16>}, {pipeline_mode = #tpu.pipeline_mode<synchronous>, transform_indices = @transform_6, window_bounds = array<i64: 1, 16>}, {transform_indices = @transform_7, window_bounds = array<i64: 256, 16>}, {transform_indices = @transform_8, window_bounds = array<i64: 256, 16>}]} {
    %c0 = arith.constant 0 : index
    %c0_0 = arith.constant 0 : index
    %0 = vector.load %arg1[%c0, %c0_0] : memref<256x16xf32, #tpu.memory_space<vmem>>, vector<256x16xf32>
    %1 = arith.truncf %0 : vector<256x16xf32> to vector<256x16xbf16>
    %c0_1 = arith.constant 0 : index
    %c0_2 = arith.constant 0 : index
    %2 = vector.load %arg2[%c0_1, %c0_2] : memref<16x32xbf16, #tpu.memory_space<vmem>>, vector<16x32xbf16>
    %cst = arith.constant dense<0.000000e+00> : vector<256x32xf32>
    %3 = tpu.matmul %1, %2, %cst {dimension_numbers = #tpu.dot_dimension_numbers<[1], [0], [0], [1], [0, 0, 1, 1], [], []>} : vector<256x16xbf16>, vector<16x32xbf16>, vector<256x32xf32> -> vector<256x32xf32>
    %c0_3 = arith.constant 0 : index
    %c0_4 = arith.constant 0 : index
    %4 = vector.load %arg3[%c0_3, %c0_4] : memref<1x32xf32, #tpu.memory_space<vmem>>, vector<1x32xf32>
    %5 = vector.broadcast %4 : vector<1x32xf32> to vector<256x32xf32>
    %6 = arith.addf %3, %5 : vector<256x32xf32>
    %cst_5 = arith.constant 0.000000e+00 : f32
    %7 = vector.broadcast %cst_5 : f32 to vector<256x32xf32>
    %8 = arith.maximumf %6, %7 : vector<256x32xf32>
    %9 = arith.truncf %8 : vector<256x32xf32> to vector<256x32xbf16>
    %c0_6 = arith.constant 0 : index
    %c0_7 = arith.constant 0 : index
    %10 = vector.load %arg4[%c0_6, %c0_7] : memref<32x16xbf16, #tpu.memory_space<vmem>>, vector<32x16xbf16>
    %cst_8 = arith.constant dense<0.000000e+00> : vector<256x16xf32>
    %11 = tpu.matmul %9, %10, %cst_8 {dimension_numbers = #tpu.dot_dimension_numbers<[1], [0], [0], [1], [0, 0, 1, 1], [], []>} : vector<256x32xbf16>, vector<32x16xbf16>, vector<256x16xf32> -> vector<256x16xf32>
    %c0_9 = arith.constant 0 : index
    %c0_10 = arith.constant 0 : index
    %12 = vector.load %arg6[%c0_9, %c0_10] : memref<32x16xbf16, #tpu.memory_space<vmem>>, vector<32x16xbf16>
    %cst_11 = arith.constant dense<0.000000e+00> : vector<256x16xf32>
    %13 = tpu.matmul %9, %12, %cst_11 {dimension_numbers = #tpu.dot_dimension_numbers<[1], [0], [0], [1], [0, 0, 1, 1], [], []>} : vector<256x32xbf16>, vector<32x16xbf16>, vector<256x16xf32> -> vector<256x16xf32>
    %c0_12 = arith.constant 0 : index
    %c0_13 = arith.constant 0 : index
    %14 = vector.load %arg5[%c0_12, %c0_13] : memref<1x16xf32, #tpu.memory_space<vmem>>, vector<1x16xf32>
    %15 = vector.broadcast %14 : vector<1x16xf32> to vector<256x16xf32>
    %16 = arith.addf %11, %15 : vector<256x16xf32>
    %c0_14 = arith.constant 0 : index
    %c0_15 = arith.constant 0 : index
    %17 = vector.load %arg8[%c0_14, %c0_15] : memref<256x16xf32, #tpu.memory_space<vmem>>, vector<256x16xf32>
    tpu.vector_store %arg8[%c0_14, %c0_15], %16 {strides = array<i32>} : memref<256x16xf32, #tpu.memory_space<vmem>>, vector<256x16xf32>,
    %c0_16 = arith.constant 0 : index
    %c0_17 = arith.constant 0 : index
    %18 = vector.load %arg7[%c0_16, %c0_17] : memref<1x16xf32, #tpu.memory_space<vmem>>, vector<1x16xf32>
    %19 = vector.broadcast %18 : vector<1x16xf32> to vector<256x16xf32>
    %20 = arith.addf %13, %19 : vector<256x16xf32>
    %c0_18 = arith.constant 0 : index
    %c0_19 = arith.constant 0 : index
    %21 = vector.load %arg9[%c0_18, %c0_19] : memref<256x16xf32, #tpu.memory_space<vmem>>, vector<256x16xf32>
    tpu.vector_store %arg9[%c0_18, %c0_19], %20 {strides = array<i32>} : memref<256x16xf32, #tpu.memory_space<vmem>>, vector<256x16xf32>,
    return
  }
  func.func @transform_0(%arg0: i32) -> (i32, i32) {
    %c0_i32 = arith.constant 0 : i32
    %c0_i32_0 = arith.constant 0 : i32
    return %arg0, %c0_i32 : i32, i32
  }
  func.func @transform_1(%arg0: i32) -> (i32, i32) {
    %c0_i32 = arith.constant 0 : i32
    %c0_i32_0 = arith.constant 0 : i32
    %c0_i32_1 = arith.constant 0 : i32
    return %c0_i32, %c0_i32_0 : i32, i32
  }
  func.func @transform_2(%arg0: i32) -> (i32, i32) {
    %c0_i32 = arith.constant 0 : i32
    %c0_i32_0 = arith.constant 0 : i32
    %c0_i32_1 = arith.constant 0 : i32
    return %c0_i32, %c0_i32_0 : i32, i32
  }
  func.func @transform_3(%arg0: i32) -> (i32, i32) {
    %c0_i32 = arith.constant 0 : i32
    %c0_i32_0 = arith.constant 0 : i32
    %c0_i32_1 = arith.constant 0 : i32
    return %c0_i32, %c0_i32_0 : i32, i32
  }
  func.func @transform_4(%arg0: i32) -> (i32, i32) {
    %c0_i32 = arith.constant 0 : i32
    %c0_i32_0 = arith.constant 0 : i32
    %c0_i32_1 = arith.constant 0 : i32
    return %c0_i32, %c0_i32_0 : i32, i32
  }
  func.func @transform_5(%arg0: i32) -> (i32, i32) {
    %c0_i32 = arith.constant 0 : i32
    %c0_i32_0 = arith.constant 0 : i32
    %c0_i32_1 = arith.constant 0 : i32
    return %c0_i32, %c0_i32_0 : i32, i32
  }
  func.func @transform_6(%arg0: i32) -> (i32, i32) {
    %c0_i32 = arith.constant 0 : i32
    %c0_i32_0 = arith.constant 0 : i32
    %c0_i32_1 = arith.constant 0 : i32
    return %c0_i32, %c0_i32_0 : i32, i32
  }
  func.func @transform_7(%arg0: i32) -> (i32, i32) {
    %c0_i32 = arith.constant 0 : i32
    %c0_i32_0 = arith.constant 0 : i32
    return %arg0, %c0_i32 : i32, i32
  }
  func.func @transform_8(%arg0: i32) -> (i32, i32) {
    %c0_i32 = arith.constant 0 : i32
    %c0_i32_0 = arith.constant 0 : i32
    return %arg0, %c0_i32 : i32, i32
  }
}

</mosaic_0001>

<llo_original>
// kernel: tpu_custom_call.1
$region0: #{tpu_custom_call.1}
  #allocation0 [shape = 'u32[]', space=smem, size = 0x4, offset = 0x4, fixed_abs, tag = 'smem constant byte address 0x4 - core index']
  #allocation1 [shape = 'u32[72,128]{1,0:T(1,128)}', space=vmem, size = 0x9000, scoped, tag = 'internal scratch']
  %s0 = inlined_call_operand.vmem [shape: f32[512,16], index: 0, kind: input, shape index: {}]
  %s1 = inlined_call_operand.vmem [shape: bf16[16,32], index: 1, kind: input, shape index: {}]
  %s2 = inlined_call_operand.vmem [shape: f32[1,32], index: 2, kind: input, shape index: {}]
  %s3 = inlined_call_operand.vmem [shape: bf16[32,16], index: 3, kind: input, shape index: {}]
  %s4 = inlined_call_operand.vmem [shape: f32[1,16], index: 4, kind: input, shape index: {}]
  %s5 = inlined_call_operand.vmem [shape: bf16[32,16], index: 5, kind: input, shape index: {}]
  %s6 = inlined_call_operand.vmem [shape: f32[1,16], index: 6, kind: input, shape index: {}]
  %s7 = inlined_call_operand.vmem [shape: f32[512,16], index: 7, kind: output, shape index: {0}]
  %s8 = inlined_call_operand.vmem [shape: f32[512,16], index: 8, kind: output, shape index: {1}]
  %9 = xla_tuple %s7, %s8
  %s10 = sld [smem:[#allocation0]]
  $region69: #{tpu_custom_call.1} parent=0
    _
  %s12 = ssub.s32 1, %s10
  %s13 = scalar_select 0, %s12, %s10
  loop: start=0, step=1, limit=4
  $region2: #{tpu_custom_call.1} parent=0 // loop_pre_header
    _
  $region3: #{tpu_custom_call.1} parent=0 // loop_header
    %s15 = sphi 0, %s19
    %p16 = scmp.ge.s32.totalorder %s15, 4
    %s25 = sphi 0, %s27
    %s28 = sphi 0, %s25
    %s29 = sphi 0, %s28
    %s45 = sphi 0, %s29
    %s49 = sphi 0, %s49
    %s51 = sphi 0, %s49
    %s52 = sphi 0, %s51
    %s66 = sphi 0, %s52
    %s70 = sphi 0, %s70
    %s72 = sphi 0, %s70
    %s73 = sphi 0, %s72
    %s87 = sphi 0, %s73
    %s91 = sphi 0, %s91
    %s93 = sphi 0, %s91
    %s94 = sphi 0, %s93
    %s108 = sphi 0, %s94
    %s112 = sphi 0, %s112
    %s114 = sphi 0, %s112
    %s115 = sphi 0, %s114
    %s129 = sphi 0, %s115
    %s133 = sphi 0, %s133
    %s135 = sphi 0, %s133
    %s136 = sphi 0, %s135
    %s150 = sphi 0, %s136
    %s154 = sphi 0, %s154
    %s156 = sphi 0, %s154
    %s157 = sphi 0, %s156
    %s171 = sphi 0, %s157
    %s177 = sphi 0, %s179
    %s180 = sphi 0, %s177
    %s181 = sphi 0, %s180
    %s197 = sphi 0, %s181
    %s203 = sphi 0, %s205
    %s206 = sphi 0, %s203
    %s207 = sphi 0, %s206
    %s223 = sphi 0, %s207
  $region4: #{tpu_custom_call.1} parent=0 // loop_header_branch
    %18 = sbr.rel (%p16) target = $region8
  $region5: #{tpu_custom_call.1} parent=0 // loop_body
    %s20 = ssub.s32 %s15, 1
    %s21 = ssub.s32 %s15, 2
    %s22 = sadd.s32 %s15, 1
    %s23 = ssub.s32 %s15, %s22
    %p24 = scmp.eq.s32.totalorder %s23, 0
    %s26 = sadd.s32 %s25, 1
    %s27 = scalar_select %p24, %s25, %s26
    %p30 = pneg %p24
    %p31 = scmp.eq.s32.totalorder %s15, 1
    %p32 = por %p30, %p31
    %p33 = scmp.ne.s32.totalorder %s25, %s28
    %p34 = scmp.eq.s32.totalorder %s15, 0
    %p35 = por %p33, %p34
    %p36 = scmp.ne.s32.totalorder %s25, %s28
    %p37 = scmp.eq.s32.totalorder %s20, 1
    %p38 = por %p36, %p37
    %p39 = scmp.ne.s32.totalorder %s28, %s29
    %p40 = scmp.eq.s32.totalorder %s20, 0
    %p41 = por %p39, %p40
    %p42 = scmp.ne.s32.totalorder %s28, %s29
    %p43 = scmp.eq.s32.totalorder %s21, 1
    %p44 = por %p42, %p43
    %p46 = scmp.ne.s32.totalorder %s29, %s45
    %p47 = scmp.eq.s32.totalorder %s21, 0
    %p48 = por %p46, %p47
    %s50 = sadd.s32 %s49, 1
    %p53 = scmp.eq.s32.totalorder %s15, 1
    %p54 = scmp.ne.s32.totalorder %s49, %s51
    %p55 = scmp.eq.s32.totalorder %s15, 0
    %p56 = por %p54, %p55
    %p57 = scmp.ne.s32.totalorder %s49, %s51
    %p58 = scmp.eq.s32.totalorder %s20, 1
    %p59 = por %p57, %p58
    %p60 = scmp.ne.s32.totalorder %s51, %s52
    %p61 = scmp.eq.s32.totalorder %s20, 0
    %p62 = por %p60, %p61
    %p63 = scmp.ne.s32.totalorder %s51, %s52
    %p64 = scmp.eq.s32.totalorder %s21, 1
    %p65 = por %p63, %p64
    %p67 = scmp.ne.s32.totalorder %s52, %s66
    %p68 = scmp.eq.s32.totalorder %s21, 0
    %p69 = por %p67, %p68
    %s71 = sadd.s32 %s70, 1
    %p74 = scmp.eq.s32.totalorder %s15, 1
    %p75 = scmp.ne.s32.totalorder %s70, %s72
    %p76 = scmp.eq.s32.totalorder %s15, 0
    %p77 = por %p75, %p76
    %p78 = scmp.ne.s32.totalorder %s70, %s72
    %p79 = scmp.eq.s32.totalorder %s20, 1
    %p80 = por %p78, %p79
    %p81 = scmp.ne.s32.totalorder %s72, %s73
    %p82 = scmp.eq.s32.totalorder %s20, 0
    %p83 = por %p81, %p82
    %p84 = scmp.ne.s32.totalorder %s72, %s73
    %p85 = scmp.eq.s32.totalorder %s21, 1
    %p86 = por %p84, %p85
    %p88 = scmp.ne.s32.totalorder %s73, %s87
    %p89 = scmp.eq.s32.totalorder %s21, 0
    %p90 = por %p88, %p89
    %s92 = sadd.s32 %s91, 1
    %p95 = scmp.eq.s32.totalorder %s15, 1
    %p96 = scmp.ne.s32.totalorder %s91, %s93
    %p97 = scmp.eq.s32.totalorder %s15, 0
    %p98 = por %p96, %p97
    %p99 = scmp.ne.s32.totalorder %s91, %s93
    %p100 = scmp.eq.s32.totalorder %s20, 1
    %p101 = por %p99, %p100
    %p102 = scmp.ne.s32.totalorder %s93, %s94
    %p103 = scmp.eq.s32.totalorder %s20, 0
    %p104 = por %p102, %p103
    %p105 = scmp.ne.s32.totalorder %s93, %s94
    %p106 = scmp.eq.s32.totalorder %s21, 1
    %p107 = por %p105, %p106
    %p109 = scmp.ne.s32.totalorder %s94, %s108
    %p110 = scmp.eq.s32.totalorder %s21, 0
    %p111 = por %p109, %p110
    %s113 = sadd.s32 %s112, 1
    %p116 = scmp.eq.s32.totalorder %s15, 1
    %p117 = scmp.ne.s32.totalorder %s112, %s114
    %p118 = scmp.eq.s32.totalorder %s15, 0
    %p119 = por %p117, %p118
    %p120 = scmp.ne.s32.totalorder %s112, %s114
    %p121 = scmp.eq.s32.totalorder %s20, 1
    %p122 = por %p120, %p121
    %p123 = scmp.ne.s32.totalorder %s114, %s115
    %p124 = scmp.eq.s32.totalorder %s20, 0
    %p125 = por %p123, %p124
    %p126 = scmp.ne.s32.totalorder %s114, %s115
    %p127 = scmp.eq.s32.totalorder %s21, 1
    %p128 = por %p126, %p127
    %p130 = scmp.ne.s32.totalorder %s115, %s129
    %p131 = scmp.eq.s32.totalorder %s21, 0
    %p132 = por %p130, %p131
    %s134 = sadd.s32 %s133, 1
    %p137 = scmp.eq.s32.totalorder %s15, 1
    %p138 = scmp.ne.s32.totalorder %s133, %s135
    %p139 = scmp.eq.s32.totalorder %s15, 0
    %p140 = por %p138, %p139
    %p141 = scmp.ne.s32.totalorder %s133, %s135
    %p142 = scmp.eq.s32.totalorder %s20, 1
    %p143 = por %p141, %p142
    %p144 = scmp.ne.s32.totalorder %s135, %s136
    %p145 = scmp.eq.s32.totalorder %s20, 0
    %p146 = por %p144, %p145
    %p147 = scmp.ne.s32.totalorder %s135, %s136
    %p148 = scmp.eq.s32.totalorder %s21, 1
    %p149 = por %p147, %p148
    %p151 = scmp.ne.s32.totalorder %s136, %s150
    %p152 = scmp.eq.s32.totalorder %s21, 0
    %p153 = por %p151, %p152
    %s155 = sadd.s32 %s154, 1
    %p158 = scmp.eq.s32.totalorder %s15, 1
    %p159 = scmp.ne.s32.totalorder %s154, %s156
    %p160 = scmp.eq.s32.totalorder %s15, 0
    %p161 = por %p159, %p160
    %p162 = scmp.ne.s32.totalorder %s154, %s156
    %p163 = scmp.eq.s32.totalorder %s20, 1
    %p164 = por %p162, %p163
    %p165 = scmp.ne.s32.totalorder %s156, %s157
    %p166 = scmp.eq.s32.totalorder %s20, 0
    %p167 = por %p165, %p166
    %p168 = scmp.ne.s32.totalorder %s156, %s157
    %p169 = scmp.eq.s32.totalorder %s21, 1
    %p170 = por %p168, %p169
    %p172 = scmp.ne.s32.totalorder %s157, %s171
    %p173 = scmp.eq.s32.totalorder %s21, 0
    %p174 = por %p172, %p173
    %s175 = ssub.s32 %s15, %s22
    %p176 = scmp.eq.s32.totalorder %s175, 0
    %s178 = sadd.s32 %s177, 1
    %s179 = scalar_select %p176, %s177, %s178
    %p182 = pneg %p176
    %p183 = scmp.eq.s32.totalorder %s15, 1
    %p184 = por %p182, %p183
    %p185 = scmp.ne.s32.totalorder %s177, %s180
    %p186 = scmp.eq.s32.totalorder %s15, 0
    %p187 = por %p185, %p186
    %p188 = scmp.ne.s32.totalorder %s177, %s180
    %p189 = scmp.eq.s32.totalorder %s20, 1
    %p190 = por %p188, %p189
    %p191 = scmp.ne.s32.totalorder %s180, %s181
    %p192 = scmp.eq.s32.totalorder %s20, 0
    %p193 = por %p191, %p192
    %p194 = scmp.ne.s32.totalorder %s180, %s181
    %p195 = scmp.eq.s32.totalorder %s21, 1
    %p196 = por %p194, %p195
    %p198 = scmp.ne.s32.totalorder %s181, %s197
    %p199 = scmp.eq.s32.totalorder %s21, 0
    %p200 = por %p198, %p199
    %s201 = ssub.s32 %s15, %s22
    %p202 = scmp.eq.s32.totalorder %s201, 0
    %s204 = sadd.s32 %s203, 1
    %s205 = scalar_select %p202, %s203, %s204
    %p208 = pneg %p202
    %p209 = scmp.eq.s32.totalorder %s15, 1
    %p210 = por %p208, %p209
    %p211 = scmp.ne.s32.totalorder %s203, %s206
    %p212 = scmp.eq.s32.totalorder %s15, 0
    %p213 = por %p211, %p212
    %p214 = scmp.ne.s32.totalorder %s203, %s206
    %p215 = scmp.eq.s32.totalorder %s20, 1
    %p216 = por %p214, %p215
    %p217 = scmp.ne.s32.totalorder %s206, %s207
    %p218 = scmp.eq.s32.totalorder %s20, 0
    %p219 = por %p217, %p218
    %p220 = scmp.ne.s32.totalorder %s206, %s207
    %p221 = scmp.eq.s32.totalorder %s21, 1
    %p222 = por %p220, %p221
    %p224 = scmp.ne.s32.totalorder %s207, %s223
    %p225 = scmp.eq.s32.totalorder %s21, 0
    %p226 = por %p224, %p225
    %p227 = scmp.le.s32.totalorder 1, %s15
    %p228 = scmp.lt.s32.totalorder %s15, 3
    %p229 = pnand %p227, %p228
    %p230 = pneg %p229
    // Predicated region
    $region9: #{tpu_custom_call.1} parent=5 // pred_check
      _
    $region10: #{tpu_custom_call.1} parent=5 // pred_check_branch
      %232 = sbr.rel (%p229) target = $region12
    $region11: #{tpu_custom_call.1} parent=5 // pred_region
      %s233 = ssub.s32 %s15, 1
      // Predicated region
      $region13: #{tpu_custom_call.1} parent=11 // pred_check
        %p234 = pneg %p62
      $region14: #{tpu_custom_call.1} parent=11 // pred_check_branch
        %236 = sbr.rel (%p234) target = $region16
      $region15: #{tpu_custom_call.1} parent=11 // pred_region
        _
      $region16: #{tpu_custom_call.1} parent=11 // pred_fallthru
        _
      // Predicated region
      $region17: #{tpu_custom_call.1} parent=11 // pred_check
        %p237 = pneg %p83
      $region18: #{tpu_custom_call.1} parent=11 // pred_check_branch
        %239 = sbr.rel (%p237) target = $region20
      $region19: #{tpu_custom_call.1} parent=11 // pred_region
        _
      $region20: #{tpu_custom_call.1} parent=11 // pred_fallthru
        _
      // Predicated region
      $region21: #{tpu_custom_call.1} parent=11 // pred_check
        %p240 = pneg %p104
      $region22: #{tpu_custom_call.1} parent=11 // pred_check_branch
        %242 = sbr.rel (%p240) target = $region24
      $region23: #{tpu_custom_call.1} parent=11 // pred_region
        _
      $region24: #{tpu_custom_call.1} parent=11 // pred_fallthru
        _
      // Predicated region
      $region25: #{tpu_custom_call.1} parent=11 // pred_check
        %p243 = pneg %p125
      $region26: #{tpu_custom_call.1} parent=11 // pred_check_branch
        %245 = sbr.rel (%p243) target = $region28
      $region27: #{tpu_custom_call.1} parent=11 // pred_region
        _
      $region28: #{tpu_custom_call.1} parent=11 // pred_fallthru
        _
      // Predicated region
      $region29: #{tpu_custom_call.1} parent=11 // pred_check
        %p246 = pneg %p146
      $region30: #{tpu_custom_call.1} parent=11 // pred_check_branch
        %248 = sbr.rel (%p246) target = $region32
      $region31: #{tpu_custom_call.1} parent=11 // pred_region
        _
      $region32: #{tpu_custom_call.1} parent=11 // pred_fallthru
        _
      // Predicated region
      $region33: #{tpu_custom_call.1} parent=11 // pred_check
        %p249 = pneg %p167
      $region34: #{tpu_custom_call.1} parent=11 // pred_check_branch
        %251 = sbr.rel (%p249) target = $region36
      $region35: #{tpu_custom_call.1} parent=11 // pred_region
        _
      $region36: #{tpu_custom_call.1} parent=11 // pred_fallthru
        _
    $region12: #{tpu_custom_call.1} parent=5 // pred_fallthru
      _
    %p252 = scmp.lt.s32.totalorder %s15, 2
    // Predicated region
    $region37: #{tpu_custom_call.1} parent=5 // pred_check
      %p253 = pneg %p252
    $region38: #{tpu_custom_call.1} parent=5 // pred_check_branch
      %255 = sbr.rel (%p253) target = $region40
    $region39: #{tpu_custom_call.1} parent=5 // pred_region
      // Predicated region
      $region41: #{tpu_custom_call.1} parent=39 // pred_check
        %p256 = pneg %p35
      $region42: #{tpu_custom_call.1} parent=39 // pred_check_branch
        %258 = sbr.rel (%p256) target = $region44
      $region43: #{tpu_custom_call.1} parent=39 // pred_region
        %s259 = smul.u32 32, %s15
        %p260 = scmp.lt.s32.totalorder %s259, 63
        %s261 = scalar_select %p260, %s259, 63
        %s262 = smul.addr %s261, 8
        %s263 = scalar_lea.vmem %s0, %s262
        %s264 = smul.u32 32, %s15
      $region44: #{tpu_custom_call.1} parent=39 // pred_fallthru
        _
    $region40: #{tpu_custom_call.1} parent=5 // pred_fallthru
      _
    %p265 = scmp.le.s32.totalorder 1, %s15
    %p266 = scmp.lt.s32.totalorder %s15, 3
    %p267 = pnand %p265, %p266
    %p268 = pneg %p267
    // Predicated region
    $region45: #{tpu_custom_call.1} parent=5 // pred_check
      _
    $region46: #{tpu_custom_call.1} parent=5 // pred_check_branch
      %270 = sbr.rel (%p267) target = $region48
    $region47: #{tpu_custom_call.1} parent=5 // pred_region
      %s271 = ssub.s32 %s15, 1
      %s272 = smul.u32 32, %s20
      %p273 = scmp.lt.s32.totalorder %s272, 63
      %s274 = scalar_select %p273, %s272, 63
      %s275 = smul.addr %s274, 8
      %s276 = scalar_lea.vmem %s0, %s275
      %p277 = pneg %p41
      %p278 = pneg %p38
      %p279 = pneg %p62
      %p280 = pneg %p59
      %p281 = pneg %p83
      %p282 = pneg %p80
      %p283 = pneg %p104
      %p284 = pneg %p101
      %p285 = pneg %p125
      %p286 = pneg %p122
      %p287 = pneg %p146
      %p288 = pneg %p143
      %p289 = pneg %p167
      %p290 = pneg %p164
      %p291 = pneg %p193
      %p292 = pneg %p190
      %s293 = smul.u32 32, %s20
      %p294 = scmp.lt.s32.totalorder %s293, 63
      %s295 = scalar_select %p294, %s293, 63
      %s296 = smul.addr %s295, 8
      %s297 = scalar_lea.vmem %s7, %s296
      %p298 = pneg %p219
      %p299 = pneg %p216
      %s300 = smul.u32 32, %s20
      %p301 = scmp.lt.s32.totalorder %s300, 63
      %s302 = scalar_select %p301, %s300, 63
      %s303 = smul.addr %s302, 8
      %s304 = scalar_lea.vmem %s8, %s303
      %s305 = smul.u32 32, %s20
      %p306 = scmp.lt.s32.totalorder %s305, 63
      %s307 = scalar_select %p306, %s305, 63
      %s308 = smul.addr %s307, 8
      %s309 = scalar_lea.vmem %s0, %s308
      %s310 = smul.u32 32, %s20
      %s311 = smul.u32 32, %s20
      %p312 = scmp.lt.s32.totalorder %s311, 63
      %s313 = scalar_select %p312, %s311, 63
      %s314 = smul.addr %s313, 8
      %s315 = scalar_lea.vmem %s7, %s314
      %s316 = smul.u32 32, %s20
      %s317 = smul.u32 32, %s20
      %p318 = scmp.lt.s32.totalorder %s317, 63
      %s319 = scalar_select %p318, %s317, 63
      %s320 = smul.addr %s319, 8
      %s321 = scalar_lea.vmem %s8, %s320
      %s322 = smul.u32 32, %s20
      %v324 = vld [vmem:[%s309] sm:$0xff]
      %v325 = vld [vmem:[%s309 + $0x8] sm:$0xff]
      %v326 = vld [vmem:[%s309 + $0x10] sm:$0xff]
      %v327 = vld [vmem:[%s309 + $0x18] sm:$0xff]
      %v328 = vld [vmem:[%s309 + $0x20] sm:$0xff]
      %v329 = vld [vmem:[%s309 + $0x28] sm:$0xff]
      %v330 = vld [vmem:[%s309 + $0x30] sm:$0xff]
      %v331 = vld [vmem:[%s309 + $0x38] sm:$0xff]
      %v332 = vld [vmem:[%s309 + $0x40] sm:$0xff]
      %v333 = vld [vmem:[%s309 + $0x48] sm:$0xff]
      %v334 = vld [vmem:[%s309 + $0x50] sm:$0xff]
      %v335 = vld [vmem:[%s309 + $0x58] sm:$0xff]
      %v336 = vld [vmem:[%s309 + $0x60] sm:$0xff]
      %v337 = vld [vmem:[%s309 + $0x68] sm:$0xff]
      %v338 = vld [vmem:[%s309 + $0x70] sm:$0xff]
      %v339 = vld [vmem:[%s309 + $0x78] sm:$0xff]
      %v340 = vld [vmem:[%s309 + $0x80] sm:$0xff]
      %v341 = vld [vmem:[%s309 + $0x88] sm:$0xff]
      %v342 = vld [vmem:[%s309 + $0x90] sm:$0xff]
      %v343 = vld [vmem:[%s309 + $0x98] sm:$0xff]
      %v344 = vld [vmem:[%s309 + $0xa0] sm:$0xff]
      %v345 = vld [vmem:[%s309 + $0xa8] sm:$0xff]
      %v346 = vld [vmem:[%s309 + $0xb0] sm:$0xff]
      %v347 = vld [vmem:[%s309 + $0xb8] sm:$0xff]
      %v348 = vld [vmem:[%s309 + $0xc0] sm:$0xff]
      %v349 = vld [vmem:[%s309 + $0xc8] sm:$0xff]
      %v350 = vld [vmem:[%s309 + $0xd0] sm:$0xff]
      %v351 = vld [vmem:[%s309 + $0xd8] sm:$0xff]
      %v352 = vld [vmem:[%s309 + $0xe0] sm:$0xff]
      %v353 = vld [vmem:[%s309 + $0xe8] sm:$0xff]
      %v354 = vld [vmem:[%s309 + $0xf0] sm:$0xff]
      %v355 = vld [vmem:[%s309 + $0xf8] sm:$0xff]
      %v356 = vpack.c.bf16 %v325, %v324
      %v357 = vpack.c.bf16 %v327, %v326
      %v358 = vpack.c.bf16 %v329, %v328
      %v359 = vpack.c.bf16 %v331, %v330
      %v360 = vpack.c.bf16 %v333, %v332
      %v361 = vpack.c.bf16 %v335, %v334
      %v362 = vpack.c.bf16 %v337, %v336
      %v363 = vpack.c.bf16 %v339, %v338
      %v364 = vpack.c.bf16 %v341, %v340
      %v365 = vpack.c.bf16 %v343, %v342
      %v366 = vpack.c.bf16 %v345, %v344
      %v367 = vpack.c.bf16 %v347, %v346
      %v368 = vpack.c.bf16 %v349, %v348
      %v369 = vpack.c.bf16 %v351, %v350
      %v370 = vpack.c.bf16 %v353, %v352
      %v371 = vpack.c.bf16 %v355, %v354
      %v372 = vld [vmem:[%s1] sm:$0xf]
      %v373 = vld [vmem:[%s1 + $0x4] sm:$0xf]
      %v374 = vld [vmem:[%s2] sm:$0x1]
      %v376 = vperm.slane %v374, 0
      %v380 = vunpack.c.l.b16 %v372
      %v381 = vunpack.c.l.b16 %v373
      %v382 = vpack.c.b16 %v381, %v380
      %vm384 = vcmask 130048
      %v386 = vsel %vm384, %v356, 0
      %v389 = vsel %vm384, %v357, 0
      %v392 = vsel %vm384, %v358, 0
      %v395 = vsel %vm384, %v359, 0
      %v398 = vsel %vm384, %v360, 0
      %v401 = vsel %vm384, %v361, 0
      %v404 = vsel %vm384, %v362, 0
      %v407 = vsel %vm384, %v363, 0
      %v410 = vsel %vm384, %v364, 0
      %v413 = vsel %vm384, %v365, 0
      %v416 = vsel %vm384, %v366, 0
      %v419 = vsel %vm384, %v367, 0
      %v422 = vsel %vm384, %v368, 0
      %v425 = vsel %vm384, %v369, 0
      %v428 = vsel %vm384, %v370, 0
      %v431 = vsel %vm384, %v371, 0
      %433 = vmatpush.bf16.msra.mxu0 0
      %434 = vmatpush.bf16.msra.mxu0 0
      %435 = vmatpush.bf16.msra.mxu0 0
      %436 = vmatpush.bf16.msra.mxu0 0
      %437 = vmatpush.bf16.msra.mxu0 0
      %438 = vmatpush.bf16.msra.mxu0 0
      %439 = vmatpush.bf16.msra.mxu0 0
      %440 = vmatpush.bf16.msra.mxu0 %v382
      %441 = vmatmul.bf16.gmra.mxu0 %v386
      %v442 = vpop.f32.mrf.mxu0
      %v443 = vadd.f32 %v376, %v442
      %v444 = vpop.f32.mrf.mxu0
      %v445 = vadd.f32 %v376, %v444
      %446 = vmatmul.bf16.gmra.mxu0 %v389
      %v447 = vpop.f32.mrf.mxu0
      %v448 = vadd.f32 %v376, %v447
      %v449 = vpop.f32.mrf.mxu0
      %v450 = vadd.f32 %v376, %v449
      %451 = vmatmul.bf16.gmra.mxu0 %v392
      %v452 = vpop.f32.mrf.mxu0
      %v453 = vadd.f32 %v376, %v452
      %v454 = vpop.f32.mrf.mxu0
      %v455 = vadd.f32 %v376, %v454
      %456 = vmatmul.bf16.gmra.mxu0 %v395
      %v457 = vpop.f32.mrf.mxu0
      %v458 = vadd.f32 %v376, %v457
      %v459 = vpop.f32.mrf.mxu0
      %v460 = vadd.f32 %v376, %v459
      %461 = vmatmul.bf16.gmra.mxu0 %v398
      %v462 = vpop.f32.mrf.mxu0
      %v463 = vadd.f32 %v376, %v462
      %v464 = vpop.f32.mrf.mxu0
      %v465 = vadd.f32 %v376, %v464
      %466 = vmatmul.bf16.gmra.mxu0 %v401
      %v467 = vpop.f32.mrf.mxu0
      %v468 = vadd.f32 %v376, %v467
      %v469 = vpop.f32.mrf.mxu0
      %v470 = vadd.f32 %v376, %v469
      %471 = vmatmul.bf16.gmra.mxu0 %v404
      %v472 = vpop.f32.mrf.mxu0
      %v473 = vadd.f32 %v376, %v472
      %v474 = vpop.f32.mrf.mxu0
      %v475 = vadd.f32 %v376, %v474
      %476 = vmatmul.bf16.gmra.mxu0 %v407
      %v477 = vpop.f32.mrf.mxu0
      %v478 = vadd.f32 %v376, %v477
      %v479 = vpop.f32.mrf.mxu0
      %v480 = vadd.f32 %v376, %v479
      %481 = vmatmul.bf16.gmra.mxu0 %v410
      %v482 = vpop.f32.mrf.mxu0
      %v483 = vadd.f32 %v376, %v482
      %v484 = vpop.f32.mrf.mxu0
      %v485 = vadd.f32 %v376, %v484
      %486 = vmatmul.bf16.gmra.mxu0 %v413
      %v487 = vpop.f32.mrf.mxu0
      %v488 = vadd.f32 %v376, %v487
      %v489 = vpop.f32.mrf.mxu0
      %v490 = vadd.f32 %v376, %v489
      %491 = vmatmul.bf16.gmra.mxu0 %v416
      %v492 = vpop.f32.mrf.mxu0
      %v493 = vadd.f32 %v376, %v492
      %v494 = vpop.f32.mrf.mxu0
      %v495 = vadd.f32 %v376, %v494
      %496 = vmatmul.bf16.gmra.mxu0 %v419
      %v497 = vpop.f32.mrf.mxu0
      %v498 = vadd.f32 %v376, %v497
      %v499 = vpop.f32.mrf.mxu0
      %v500 = vadd.f32 %v376, %v499
      %501 = vmatmul.bf16.gmra.mxu0 %v422
      %v502 = vpop.f32.mrf.mxu0
      %v503 = vadd.f32 %v376, %v502
      %v504 = vpop.f32.mrf.mxu0
      %v505 = vadd.f32 %v376, %v504
      %506 = vmatmul.bf16.gmra.mxu0 %v425
      %v507 = vpop.f32.mrf.mxu0
      %v508 = vadd.f32 %v376, %v507
      %v509 = vpop.f32.mrf.mxu0
      %v510 = vadd.f32 %v376, %v509
      %511 = vmatmul.bf16.gmra.mxu0 %v428
      %v512 = vpop.f32.mrf.mxu0
      %v513 = vadd.f32 %v376, %v512
      %v514 = vpop.f32.mrf.mxu0
      %v515 = vadd.f32 %v376, %v514
      %516 = vmatmul.bf16.gmra.mxu0 %v431
      %v517 = vpop.f32.mrf.mxu0
      %v518 = vadd.f32 %v376, %v517
      %v519 = vpop.f32.mrf.mxu0
      %v520 = vadd.f32 %v376, %v519
      %521 = vdwg.mxu0
      %v522 = vmax.f32 %v443, 0.0
      %v523 = vmax.f32 %v445, 0.0
      %v524 = vmax.f32 %v448, 0.0
      %v525 = vmax.f32 %v450, 0.0
      %v526 = vmax.f32 %v453, 0.0
      %v527 = vmax.f32 %v455, 0.0
      %v528 = vmax.f32 %v458, 0.0
      %v529 = vmax.f32 %v460, 0.0
      %v530 = vmax.f32 %v463, 0.0
      %v531 = vmax.f32 %v465, 0.0
      %v532 = vmax.f32 %v468, 0.0
      %v533 = vmax.f32 %v470, 0.0
      %v534 = vmax.f32 %v473, 0.0
      %v535 = vmax.f32 %v475, 0.0
      %v536 = vmax.f32 %v478, 0.0
      %v537 = vmax.f32 %v480, 0.0
      %v538 = vmax.f32 %v483, 0.0
      %v539 = vmax.f32 %v485, 0.0
      %v540 = vmax.f32 %v488, 0.0
      %v541 = vmax.f32 %v490, 0.0
      %v542 = vmax.f32 %v493, 0.0
      %v543 = vmax.f32 %v495, 0.0
      %v544 = vmax.f32 %v498, 0.0
      %v545 = vmax.f32 %v500, 0.0
      %v546 = vmax.f32 %v503, 0.0
      %v547 = vmax.f32 %v505, 0.0
      %v548 = vmax.f32 %v508, 0.0
      %v549 = vmax.f32 %v510, 0.0
      %v550 = vmax.f32 %v513, 0.0
      %v551 = vmax.f32 %v515, 0.0
      %v552 = vmax.f32 %v518, 0.0
      %v553 = vmax.f32 %v520, 0.0
      %v554 = vpack.c.bf16 %v523, %v522
      %v555 = vpack.c.bf16 %v525, %v524
      %v556 = vpack.c.bf16 %v527, %v526
      %v557 = vpack.c.bf16 %v529, %v528
      %v558 = vpack.c.bf16 %v531, %v530
      %v559 = vpack.c.bf16 %v533, %v532
      %v560 = vpack.c.bf16 %v535, %v534
      %v561 = vpack.c.bf16 %v537, %v536
      %v562 = vpack.c.bf16 %v539, %v538
      %v563 = vpack.c.bf16 %v541, %v540
      %v564 = vpack.c.bf16 %v543, %v542
      %v565 = vpack.c.bf16 %v545, %v544
      %v566 = vpack.c.bf16 %v547, %v546
      %v567 = vpack.c.bf16 %v549, %v548
      %v568 = vpack.c.bf16 %v551, %v550
      %v569 = vpack.c.bf16 %v553, %v552
      %v570 = vld [vmem:[%s3] sm:$0xf]
      %v571 = vld [vmem:[%s3 + $0x4] sm:$0xf]
      %v572 = vld [vmem:[%s3 + $0x8] sm:$0xf]
      %v573 = vld [vmem:[%s3 + $0xc] sm:$0xf]
      %v574 = vld [vmem:[%s5] sm:$0xf]
      %v575 = vld [vmem:[%s5 + $0x4] sm:$0xf]
      %v576 = vld [vmem:[%s5 + $0x8] sm:$0xf]
      %v577 = vld [vmem:[%s5 + $0xc] sm:$0xf]
      %v578 = vld [vmem:[%s4] sm:$0x1]
      %v580 = vperm.slane %v578, 0
      %v586 = vunpack.c.l.b16 %v570
      %v587 = vunpack.c.l.b16 %v571
      %v588 = vunpack.c.l.b16 %v572
      %v589 = vunpack.c.l.b16 %v573
      %v590 = vpack.c.b16 %v587, %v586
      %v591 = vpack.c.b16 %v589, %v588
      %vm594 = vcmask 261120
      %v596 = vsel %vm594, %v554, 0
      %v599 = vsel %vm594, %v555, 0
      %v602 = vsel %vm594, %v556, 0
      %v605 = vsel %vm594, %v557, 0
      %v608 = vsel %vm594, %v558, 0
      %v611 = vsel %vm594, %v559, 0
      %v614 = vsel %vm594, %v560, 0
      %v617 = vsel %vm594, %v561, 0
      %v620 = vsel %vm594, %v562, 0
      %v623 = vsel %vm594, %v563, 0
      %v626 = vsel %vm594, %v564, 0
      %v629 = vsel %vm594, %v565, 0
      %v632 = vsel %vm594, %v566, 0
      %v635 = vsel %vm594, %v567, 0
      %v638 = vsel %vm594, %v568, 0
      %v641 = vsel %vm594, %v569, 0
      %643 = vmatpush.bf16.msra.mxu0 0
      %644 = vmatpush.bf16.msra.mxu0 0
      %645 = vmatpush.bf16.msra.mxu0 0
      %646 = vmatpush.bf16.msra.mxu0 0
      %647 = vmatpush.bf16.msra.mxu0 0
      %648 = vmatpush.bf16.msra.mxu0 0
      %649 = vmatpush.bf16.msra.mxu0 %v591
      %650 = vmatpush.bf16.msra.mxu0 %v590
      %651 = vmatmul.bf16.gmra.mxu0 %v596
      %v652 = vpop.f32.mrf.mxu0
      %v653 = vadd.f32 %v580, %v652
      %v654 = vpop.f32.mrf.mxu0
      %v655 = vadd.f32 %v580, %v654
      %656 = vmatmul.bf16.gmra.mxu0 %v599
      %v657 = vpop.f32.mrf.mxu0
      %v658 = vadd.f32 %v580, %v657
      %v659 = vpop.f32.mrf.mxu0
      %v660 = vadd.f32 %v580, %v659
      %661 = vmatmul.bf16.gmra.mxu0 %v602
      %v662 = vpop.f32.mrf.mxu0
      %v663 = vadd.f32 %v580, %v662
      %v664 = vpop.f32.mrf.mxu0
      %v665 = vadd.f32 %v580, %v664
      %666 = vmatmul.bf16.gmra.mxu0 %v605
      %v667 = vpop.f32.mrf.mxu0
      %v668 = vadd.f32 %v580, %v667
      %v669 = vpop.f32.mrf.mxu0
      %v670 = vadd.f32 %v580, %v669
      %671 = vmatmul.bf16.gmra.mxu0 %v608
      %v672 = vpop.f32.mrf.mxu0
      %v673 = vadd.f32 %v580, %v672
      %v674 = vpop.f32.mrf.mxu0
      %v675 = vadd.f32 %v580, %v674
      %676 = vmatmul.bf16.gmra.mxu0 %v611
      %v677 = vpop.f32.mrf.mxu0
      %v678 = vadd.f32 %v580, %v677
      %v679 = vpop.f32.mrf.mxu0
      %v680 = vadd.f32 %v580, %v679
      %681 = vmatmul.bf16.gmra.mxu0 %v614
      %v682 = vpop.f32.mrf.mxu0
      %v683 = vadd.f32 %v580, %v682
      %v684 = vpop.f32.mrf.mxu0
      %v685 = vadd.f32 %v580, %v684
      %686 = vmatmul.bf16.gmra.mxu0 %v617
      %v687 = vpop.f32.mrf.mxu0
      %v688 = vadd.f32 %v580, %v687
      %v689 = vpop.f32.mrf.mxu0
      %v690 = vadd.f32 %v580, %v689
      %691 = vmatmul.bf16.gmra.mxu0 %v620
      %v692 = vpop.f32.mrf.mxu0
      %v693 = vadd.f32 %v580, %v692
      %v694 = vpop.f32.mrf.mxu0
      %v695 = vadd.f32 %v580, %v694
      %696 = vmatmul.bf16.gmra.mxu0 %v623
      %v697 = vpop.f32.mrf.mxu0
      %v698 = vadd.f32 %v580, %v697
      %v699 = vpop.f32.mrf.mxu0
      %v700 = vadd.f32 %v580, %v699
      %701 = vmatmul.bf16.gmra.mxu0 %v626
      %v702 = vpop.f32.mrf.mxu0
      %v703 = vadd.f32 %v580, %v702
      %v704 = vpop.f32.mrf.mxu0
      %v705 = vadd.f32 %v580, %v704
      %706 = vmatmul.bf16.gmra.mxu0 %v629
      %v707 = vpop.f32.mrf.mxu0
      %v708 = vadd.f32 %v580, %v707
      %v709 = vpop.f32.mrf.mxu0
      %v710 = vadd.f32 %v580, %v709
      %711 = vmatmul.bf16.gmra.mxu0 %v632
      %v712 = vpop.f32.mrf.mxu0
      %v713 = vadd.f32 %v580, %v712
      %v714 = vpop.f32.mrf.mxu0
      %v715 = vadd.f32 %v580, %v714
      %716 = vmatmul.bf16.gmra.mxu0 %v635
      %v717 = vpop.f32.mrf.mxu0
      %v718 = vadd.f32 %v580, %v717
      %v719 = vpop.f32.mrf.mxu0
      %v720 = vadd.f32 %v580, %v719
      %721 = vmatmul.bf16.gmra.mxu0 %v638
      %v722 = vpop.f32.mrf.mxu0
      %v723 = vadd.f32 %v580, %v722
      %v724 = vpop.f32.mrf.mxu0
      %v725 = vadd.f32 %v580, %v724
      %726 = vmatmul.bf16.gmra.mxu0 %v641
      %v727 = vpop.f32.mrf.mxu0
      %v728 = vadd.f32 %v580, %v727
      %v729 = vpop.f32.mrf.mxu0
      %v730 = vadd.f32 %v580, %v729
      %731 = vdwg.mxu0
      %732 = vst.msk [vmem:[%s315] sm:$0xff] %vm384, %v653
      %733 = vst.msk [vmem:[%s315 + $0x8] sm:$0xff] %vm384, %v655
      %734 = vst.msk [vmem:[%s315 + $0x10] sm:$0xff] %vm384, %v658
      %735 = vst.msk [vmem:[%s315 + $0x18] sm:$0xff] %vm384, %v660
      %736 = vst.msk [vmem:[%s315 + $0x20] sm:$0xff] %vm384, %v663
      %737 = vst.msk [vmem:[%s315 + $0x28] sm:$0xff] %vm384, %v665
      %738 = vst.msk [vmem:[%s315 + $0x30] sm:$0xff] %vm384, %v668
      %739 = vst.msk [vmem:[%s315 + $0x38] sm:$0xff] %vm384, %v670
      %740 = vst.msk [vmem:[%s315 + $0x40] sm:$0xff] %vm384, %v673
      %741 = vst.msk [vmem:[%s315 + $0x48] sm:$0xff] %vm384, %v675
      %742 = vst.msk [vmem:[%s315 + $0x50] sm:$0xff] %vm384, %v678
      %743 = vst.msk [vmem:[%s315 + $0x58] sm:$0xff] %vm384, %v680
      %744 = vst.msk [vmem:[%s315 + $0x60] sm:$0xff] %vm384, %v683
      %745 = vst.msk [vmem:[%s315 + $0x68] sm:$0xff] %vm384, %v685
      %746 = vst.msk [vmem:[%s315 + $0x70] sm:$0xff] %vm384, %v688
      %747 = vst.msk [vmem:[%s315 + $0x78] sm:$0xff] %vm384, %v690
      %748 = vst.msk [vmem:[%s315 + $0x80] sm:$0xff] %vm384, %v693
      %749 = vst.msk [vmem:[%s315 + $0x88] sm:$0xff] %vm384, %v695
      %750 = vst.msk [vmem:[%s315 + $0x90] sm:$0xff] %vm384, %v698
      %751 = vst.msk [vmem:[%s315 + $0x98] sm:$0xff] %vm384, %v700
      %752 = vst.msk [vmem:[%s315 + $0xa0] sm:$0xff] %vm384, %v703
      %753 = vst.msk [vmem:[%s315 + $0xa8] sm:$0xff] %vm384, %v705
      %754 = vst.msk [vmem:[%s315 + $0xb0] sm:$0xff] %vm384, %v708
      %755 = vst.msk [vmem:[%s315 + $0xb8] sm:$0xff] %vm384, %v710
      %756 = vst.msk [vmem:[%s315 + $0xc0] sm:$0xff] %vm384, %v713
      %757 = vst.msk [vmem:[%s315 + $0xc8] sm:$0xff] %vm384, %v715
      %758 = vst.msk [vmem:[%s315 + $0xd0] sm:$0xff] %vm384, %v718
      %759 = vst.msk [vmem:[%s315 + $0xd8] sm:$0xff] %vm384, %v720
      %760 = vst.msk [vmem:[%s315 + $0xe0] sm:$0xff] %vm384, %v723
      %761 = vst.msk [vmem:[%s315 + $0xe8] sm:$0xff] %vm384, %v725
      %762 = vst.msk [vmem:[%s315 + $0xf0] sm:$0xff] %vm384, %v728
      %763 = vst.msk [vmem:[%s315 + $0xf8] sm:$0xff] %vm384, %v730
      %v764 = vld [vmem:[%s6] sm:$0x1]
      %v766 = vperm.slane %v764, 0
      %v772 = vunpack.c.l.b16 %v574
      %v773 = vunpack.c.l.b16 %v575
      %v774 = vunpack.c.l.b16 %v576
      %v775 = vunpack.c.l.b16 %v577
      %v776 = vpack.c.b16 %v773, %v772
      %v777 = vpack.c.b16 %v775, %v774
      %780 = vmatpush.bf16.msra.mxu0 0
      %781 = vmatpush.bf16.msra.mxu0 0
      %782 = vmatpush.bf16.msra.mxu0 0
      %783 = vmatpush.bf16.msra.mxu0 0
      %784 = vmatpush.bf16.msra.mxu0 0
      %785 = vmatpush.bf16.msra.mxu0 0
      %786 = vmatpush.bf16.msra.mxu0 %v777
      %787 = vmatpush.bf16.msra.mxu0 %v776
      %788 = vmatmul.bf16.gmra.mxu0 %v596
      %v789 = vpop.f32.mrf.mxu0
      %v790 = vadd.f32 %v766, %v789
      %v791 = vpop.f32.mrf.mxu0
      %v792 = vadd.f32 %v766, %v791
      %793 = vmatmul.bf16.gmra.mxu0 %v599
      %v794 = vpop.f32.mrf.mxu0
      %v795 = vadd.f32 %v766, %v794
      %v796 = vpop.f32.mrf.mxu0
      %v797 = vadd.f32 %v766, %v796
      %798 = vmatmul.bf16.gmra.mxu0 %v602
      %v799 = vpop.f32.mrf.mxu0
      %v800 = vadd.f32 %v766, %v799
      %v801 = vpop.f32.mrf.mxu0
      %v802 = vadd.f32 %v766, %v801
      %803 = vmatmul.bf16.gmra.mxu0 %v605
      %v804 = vpop.f32.mrf.mxu0
      %v805 = vadd.f32 %v766, %v804
      %v806 = vpop.f32.mrf.mxu0
      %v807 = vadd.f32 %v766, %v806
      %808 = vmatmul.bf16.gmra.mxu0 %v608
      %v809 = vpop.f32.mrf.mxu0
      %v810 = vadd.f32 %v766, %v809
      %v811 = vpop.f32.mrf.mxu0
      %v812 = vadd.f32 %v766, %v811
      %813 = vmatmul.bf16.gmra.mxu0 %v611
      %v814 = vpop.f32.mrf.mxu0
      %v815 = vadd.f32 %v766, %v814
      %v816 = vpop.f32.mrf.mxu0
      %v817 = vadd.f32 %v766, %v816
      %818 = vmatmul.bf16.gmra.mxu0 %v614
      %v819 = vpop.f32.mrf.mxu0
      %v820 = vadd.f32 %v766, %v819
      %v821 = vpop.f32.mrf.mxu0
      %v822 = vadd.f32 %v766, %v821
      %823 = vmatmul.bf16.gmra.mxu0 %v617
      %v824 = vpop.f32.mrf.mxu0
      %v825 = vadd.f32 %v766, %v824
      %v826 = vpop.f32.mrf.mxu0
      %v827 = vadd.f32 %v766, %v826
      %828 = vmatmul.bf16.gmra.mxu0 %v620
      %v829 = vpop.f32.mrf.mxu0
      %v830 = vadd.f32 %v766, %v829
      %v831 = vpop.f32.mrf.mxu0
      %v832 = vadd.f32 %v766, %v831
      %833 = vmatmul.bf16.gmra.mxu0 %v623
      %v834 = vpop.f32.mrf.mxu0
      %v835 = vadd.f32 %v766, %v834
      %v836 = vpop.f32.mrf.mxu0
      %v837 = vadd.f32 %v766, %v836
      %838 = vmatmul.bf16.gmra.mxu0 %v626
      %v839 = vpop.f32.mrf.mxu0
      %v840 = vadd.f32 %v766, %v839
      %v841 = vpop.f32.mrf.mxu0
      %v842 = vadd.f32 %v766, %v841
      %843 = vmatmul.bf16.gmra.mxu0 %v629
      %v844 = vpop.f32.mrf.mxu0
      %v845 = vadd.f32 %v766, %v844
      %v846 = vpop.f32.mrf.mxu0
      %v847 = vadd.f32 %v766, %v846
      %848 = vmatmul.bf16.gmra.mxu0 %v632
      %v849 = vpop.f32.mrf.mxu0
      %v850 = vadd.f32 %v766, %v849
      %v851 = vpop.f32.mrf.mxu0
      %v852 = vadd.f32 %v766, %v851
      %853 = vmatmul.bf16.gmra.mxu0 %v635
      %v854 = vpop.f32.mrf.mxu0
      %v855 = vadd.f32 %v766, %v854
      %v856 = vpop.f32.mrf.mxu0
      %v857 = vadd.f32 %v766, %v856
      %858 = vmatmul.bf16.gmra.mxu0 %v638
      %v859 = vpop.f32.mrf.mxu0
      %v860 = vadd.f32 %v766, %v859
      %v861 = vpop.f32.mrf.mxu0
      %v862 = vadd.f32 %v766, %v861
      %863 = vmatmul.bf16.gmra.mxu0 %v641
      %v864 = vpop.f32.mrf.mxu0
      %v865 = vadd.f32 %v766, %v864
      %v866 = vpop.f32.mrf.mxu0
      %v867 = vadd.f32 %v766, %v866
      %868 = vdwg.mxu0
      %869 = vst.msk [vmem:[%s321] sm:$0xff] %vm384, %v790
      %870 = vst.msk [vmem:[%s321 + $0x8] sm:$0xff] %vm384, %v792
      %871 = vst.msk [vmem:[%s321 + $0x10] sm:$0xff] %vm384, %v795
      %872 = vst.msk [vmem:[%s321 + $0x18] sm:$0xff] %vm384, %v797
      %873 = vst.msk [vmem:[%s321 + $0x20] sm:$0xff] %vm384, %v800
      %874 = vst.msk [vmem:[%s321 + $0x28] sm:$0xff] %vm384, %v802
      %875 = vst.msk [vmem:[%s321 + $0x30] sm:$0xff] %vm384, %v805
      %876 = vst.msk [vmem:[%s321 + $0x38] sm:$0xff] %vm384, %v807
      %877 = vst.msk [vmem:[%s321 + $0x40] sm:$0xff] %vm384, %v810
      %878 = vst.msk [vmem:[%s321 + $0x48] sm:$0xff] %vm384, %v812
      %879 = vst.msk [vmem:[%s321 + $0x50] sm:$0xff] %vm384, %v815
      %880 = vst.msk [vmem:[%s321 + $0x58] sm:$0xff] %vm384, %v817
      %881 = vst.msk [vmem:[%s321 + $0x60] sm:$0xff] %vm384, %v820
      %882 = vst.msk [vmem:[%s321 + $0x68] sm:$0xff] %vm384, %v822
      %883 = vst.msk [vmem:[%s321 + $0x70] sm:$0xff] %vm384, %v825
      %884 = vst.msk [vmem:[%s321 + $0x78] sm:$0xff] %vm384, %v827
      %885 = vst.msk [vmem:[%s321 + $0x80] sm:$0xff] %vm384, %v830
      %886 = vst.msk [vmem:[%s321 + $0x88] sm:$0xff] %vm384, %v832
      %887 = vst.msk [vmem:[%s321 + $0x90] sm:$0xff] %vm384, %v835
      %888 = vst.msk [vmem:[%s321 + $0x98] sm:$0xff] %vm384, %v837
      %889 = vst.msk [vmem:[%s321 + $0xa0] sm:$0xff] %vm384, %v840
      %890 = vst.msk [vmem:[%s321 + $0xa8] sm:$0xff] %vm384, %v842
      %891 = vst.msk [vmem:[%s321 + $0xb0] sm:$0xff] %vm384, %v845
      %892 = vst.msk [vmem:[%s321 + $0xb8] sm:$0xff] %vm384, %v847
      %893 = vst.msk [vmem:[%s321 + $0xc0] sm:$0xff] %vm384, %v850
      %894 = vst.msk [vmem:[%s321 + $0xc8] sm:$0xff] %vm384, %v852
      %895 = vst.msk [vmem:[%s321 + $0xd0] sm:$0xff] %vm384, %v855
      %896 = vst.msk [vmem:[%s321 + $0xd8] sm:$0xff] %vm384, %v857
      %897 = vst.msk [vmem:[%s321 + $0xe0] sm:$0xff] %vm384, %v860
      %898 = vst.msk [vmem:[%s321 + $0xe8] sm:$0xff] %vm384, %v862
      %899 = vst.msk [vmem:[%s321 + $0xf0] sm:$0xff] %vm384, %v865
      %900 = vst.msk [vmem:[%s321 + $0xf8] sm:$0xff] %vm384, %v867
      %s901 = smul.u32 32, %s20
      %p902 = scmp.lt.s32.totalorder %s901, 63
      %s903 = scalar_select %p902, %s901, 63
      %s904 = smul.addr %s903, 8
      %s905 = scalar_lea.vmem %s7, %s904
      %s906 = smul.u32 32, %s20
      %p907 = scmp.lt.s32.totalorder %s906, 63
      %s908 = scalar_select %p907, %s906, 63
      %s909 = smul.addr %s908, 8
      %s910 = scalar_lea.vmem %s8, %s909
      // Predicated region
      $region49: #{tpu_custom_call.1} parent=47 // pred_check
        %p911 = pneg %p190
      $region50: #{tpu_custom_call.1} parent=47 // pred_check_branch
        %913 = sbr.rel (%p911) target = $region52
      $region51: #{tpu_custom_call.1} parent=47 // pred_region
        %s914 = smul.u32 32, %s20
      $region52: #{tpu_custom_call.1} parent=47 // pred_fallthru
        _
      // Predicated region
      $region53: #{tpu_custom_call.1} parent=47 // pred_check
        %p915 = pneg %p216
      $region54: #{tpu_custom_call.1} parent=47 // pred_check_branch
        %917 = sbr.rel (%p915) target = $region56
      $region55: #{tpu_custom_call.1} parent=47 // pred_region
        %s918 = smul.u32 32, %s20
      $region56: #{tpu_custom_call.1} parent=47 // pred_fallthru
        _
    $region48: #{tpu_custom_call.1} parent=5 // pred_fallthru
      _
    %p919 = scmp.le.s32.totalorder 2, %s15
    // Predicated region
    $region57: #{tpu_custom_call.1} parent=5 // pred_check
      %p920 = pneg %p919
    $region58: #{tpu_custom_call.1} parent=5 // pred_check_branch
      %922 = sbr.rel (%p920) target = $region60
    $region59: #{tpu_custom_call.1} parent=5 // pred_region
      %s923 = ssub.s32 %s15, 2
      // Predicated region
      $region61: #{tpu_custom_call.1} parent=59 // pred_check
        %p924 = pneg %p196
      $region62: #{tpu_custom_call.1} parent=59 // pred_check_branch
        %926 = sbr.rel (%p924) target = $region64
      $region63: #{tpu_custom_call.1} parent=59 // pred_region
        %s927 = smul.u32 32, %s21
        %p928 = scmp.lt.s32.totalorder %s927, 63
        %s929 = scalar_select %p928, %s927, 63
        %s930 = smul.addr %s929, 8
        %s931 = scalar_lea.vmem %s7, %s930
      $region64: #{tpu_custom_call.1} parent=59 // pred_fallthru
        _
      // Predicated region
      $region65: #{tpu_custom_call.1} parent=59 // pred_check
        %p932 = pneg %p222
      $region66: #{tpu_custom_call.1} parent=59 // pred_check_branch
        %934 = sbr.rel (%p932) target = $region68
      $region67: #{tpu_custom_call.1} parent=59 // pred_region
        %s935 = smul.u32 32, %s21
        %p936 = scmp.lt.s32.totalorder %s935, 63
        %s937 = scalar_select %p936, %s935, 63
        %s938 = smul.addr %s937, 8
        %s939 = scalar_lea.vmem %s8, %s938
      $region68: #{tpu_custom_call.1} parent=59 // pred_fallthru
        _
    $region60: #{tpu_custom_call.1} parent=5 // pred_fallthru
      _
  $region6: #{tpu_custom_call.1} parent=0 // loop_footer
    %s19 = sadd.s32 1, %s15
  $region7: #{tpu_custom_call.1} parent=0 // loop_footer_branch
    %14 = sbr.rel target = $region3
  $region8: #{tpu_custom_call.1} parent=0 // loop_exit
    _

</llo_original>
